<compile_context>
chip_gen: v7x
topology: tpu7x:2x2x1
jax: 0.10.0
libtpu: 0.0.40
codegen_flags: <defaults>
</compile_context>

<pallas_src>
import functools

import numpy as np
import jax
import jax.numpy as jnp
from jax import lax
from jax.experimental import pallas as pl
from jax.experimental.pallas import tpu as pltpu

MARGIN = 0.2
EPS = 1e-8  # torch cosine_similarity default eps (clamped on the norm product,
            # same as the previous version of this kernel)


def _round_up(x, m):
    return (x + m - 1) // m * m


# -----------------------------------------------------------------------------
# Pass 1: row-wise cosine similarity, tiled over the batch (lane-dense output).
# -----------------------------------------------------------------------------
def _cosine_sims_kernel(img_ref, txt_ref, sims_ref):
    img = img_ref[...]                                   # (TB, D) f32
    txt = txt_ref[...]                                   # (TB, D) f32
    dot = jnp.sum(img * txt, axis=-1)                    # (TB,)
    nii = jnp.sum(img * img, axis=-1)                    # (TB,)
    ntt = jnp.sum(txt * txt, axis=-1)                    # (TB,)
    # one rsqrt (EUP slot, otherwise idle) replaces 2x sqrt + divide (VPU).
    inv = lax.rsqrt(jnp.maximum(nii * ntt, EPS * EPS))   # (TB,)
    sims_ref[0, :] = dot * inv                           # lane-dense (1, TB)


# -----------------------------------------------------------------------------
# Pass 2: index-select positives/negatives, hinge, masked mean.
# -----------------------------------------------------------------------------
def _hinge_loss_kernel(cnt_ref, sims_ref, pos_ref, neg_ref, loss_ref, *, margin):
    s = sims_ref[...]                                    # (1, Bp) f32, lane-dense
    m_pad, _ = pos_ref.shape
    bp = s.shape[-1]

    # In-kernel one-hot selection built from int32 indices (no [M, B] matrices
    # in HBM, no N=1 MXU matmul): sel[j, b] = (b == idx[j]).
    lane = lax.broadcasted_iota(jnp.int32, (m_pad, bp), 1)
    pos = jnp.sum(jnp.where(lane == pos_ref[...], s, 0.0), axis=-1, keepdims=True)
    neg = jnp.sum(jnp.where(lane == neg_ref[...], s, 0.0), axis=-1, keepdims=True)

    hinge = jnp.maximum(margin - pos + neg, 0.0)         # (Mpad, 1)

    # Mask padded pairs; divide by the *true* pair count (runtime SMEM scalar).
    m_true = cnt_ref[0]
    row = lax.broadcasted_iota(jnp.int32, (m_pad, 1), 0)
    terms = jnp.where(row < m_true, hinge, 0.0) / m_true.astype(jnp.float32)
    # (1,1) VMEM output: a single masked store is negligible here; an SMEM
    # scalar output would need an extra vector->scalar move for the reduction.
    loss_ref[0, 0] = jnp.sum(terms)


# -----------------------------------------------------------------------------
# Host wrapper
# -----------------------------------------------------------------------------
def contrastive_loss(image_features, text_features, labels, margin=MARGIN, block_b=256):
    """Pallas implementation of ContrastiveLoss.forward.

    `labels` must be concrete (numpy): the positive/negative split is
    data-dependent boolean-mask indexing in the PyTorch module.
    """
    # TODO(synk): labels==1 / labels==0 boolean-mask indexing is data-dependent;
    # it is resolved host-side into bucketed index vectors + a runtime count.
    labels = np.asarray(labels)
    img = jnp.asarray(image_features, jnp.float32)
    txt = jnp.asarray(text_features, jnp.float32)
    b, d = img.shape

    pos_idx = np.nonzero(labels == 1)[0]
    neg_idx = np.nonzero(labels == 0)[0]
    # PyTorch broadcasts positives against negatives (equal lengths or one is 1).
    pos_b, neg_b = np.broadcast_arrays(pos_idx, neg_idx)
    m = int(pos_b.shape[0])
    assert m > 0, "need at least one positive and one negative sample"

    # --- pass 1: cosine sims over batch tiles --------------------------------
    # Multi-tile lane blocks must be a multiple of 128; single-tile covers full B.
    tb = block_b if b >= block_b else _round_up(b, 8)
    bp = _round_up(b, tb)
    if bp != b:
        img = jnp.pad(img, ((0, bp - b), (0, 0)))  # padded rows -> sims == 0, never selected
        txt = jnp.pad(txt, ((0, bp - b), (0, 0)))
    nt = bp // tb

    sims = pl.pallas_call(
        _cosine_sims_kernel,
        out_shape=jax.ShapeDtypeStruct((1, bp), jnp.float32),
        grid=(nt,),
        in_specs=[
            pl.BlockSpec((tb, d), lambda i: (i, 0)),
            pl.BlockSpec((tb, d), lambda i: (i, 0)),
        ],
        out_specs=pl.BlockSpec((1, tb), lambda i: (0, i)),
        compiler_params=pltpu.CompilerParams(
            dimension_semantics=("parallel",)),
    )(img, txt)

    # --- pass 2: index gather + hinge + masked mean ---------------------------
    m_pad = _round_up(max(m, 8), 8)  # bucket M to limit recompiles / sublane padding
    pos_pad = np.zeros((m_pad, 1), np.int32)
    neg_pad = np.zeros((m_pad, 1), np.int32)
    pos_pad[:m, 0] = pos_b
    neg_pad[:m, 0] = neg_b

    loss = pl.pallas_call(
        functools.partial(_hinge_loss_kernel, margin=float(margin)),
        out_shape=jax.ShapeDtypeStruct((1, 1), jnp.float32),
        in_specs=[
            pl.BlockSpec(memory_space=pltpu.MemorySpace.SMEM),   # true pair count
            pl.BlockSpec(memory_space=pltpu.MemorySpace.VMEM),   # sims (1, Bp)
            pl.BlockSpec(memory_space=pltpu.MemorySpace.VMEM),   # pos idx (Mpad, 1)
            pl.BlockSpec(memory_space=pltpu.MemorySpace.VMEM),   # neg idx (Mpad, 1)
        ],
        out_specs=pl.BlockSpec(memory_space=pltpu.MemorySpace.VMEM),
    )(jnp.asarray([m], jnp.int32), sims, jnp.asarray(pos_pad), jnp.asarray(neg_pad))
    return loss[0, 0]


# -----------------------------------------------------------------------------
# Reference + self-test
# -----------------------------------------------------------------------------
def _reference_loss(image_features, text_features, labels, margin=MARGIN):
    img = np.asarray(image_features, np.float64)
    txt = np.asarray(text_features, np.float64)
    labels = np.asarray(labels)
    dot = np.sum(img * txt, axis=-1)
    sims = dot / np.maximum(np.linalg.norm(img, axis=-1) * np.linalg.norm(txt, axis=-1), EPS)
    pos = sims[labels == 1]
    neg = sims[labels == 0]
    return float(np.mean(np.clip(margin - pos + neg, 0.0, None)))


if __name__ == "__main__":
    B, D = 8, 32
    key = jax.random.PRNGKey(0)
    k_img, k_txt = jax.random.split(key)
    image_features = jax.random.normal(k_img, (B, D), dtype=jnp.float32)
    text_features = jax.random.normal(k_txt, (B, D), dtype=jnp.float32)
    labels = np.array([1, 0, 1, 0, 1, 0, 1, 0], dtype=np.int32)

    loss = contrastive_loss(image_features, text_features, labels)
    loss = jax.block_until_ready(loss)

    ref = _reference_loss(np.asarray(image_features), np.asarray(text_features), labels)
    assert np.allclose(float(loss), ref, rtol=1e-4, atol=1e-5), (float(loss), ref)

    print("KERNEL_OK")
</pallas_src>

<mosaic_0001>
module attributes {stable_mosaic.version = 11 : i64} {
  func.func @_cosine_sims_kernel(%arg0: i32, %arg1: memref<8x32xf32, #tpu.memory_space<vmem>>, %arg2: memref<8x32xf32, #tpu.memory_space<vmem>>, %arg3: memref<1x8xf32, #tpu.memory_space<vmem>>) attributes {dimension_semantics = [#tpu.dimension_semantics<parallel>], iteration_bounds = array<i64: 1>, scalar_prefetch = 0 : i64, scratch_operands = 0 : i64, tpu.core_type = #tpu.core_type<tc>, window_params = [{transform_indices = @transform_0, window_bounds = array<i64: 8, 32>}, {transform_indices = @transform_1, window_bounds = array<i64: 8, 32>}, {transform_indices = @transform_2, window_bounds = array<i64: 1, 8>}]} {
    %c0 = arith.constant 0 : index
    %c0_0 = arith.constant 0 : index
    %0 = vector.load %arg1[%c0, %c0_0] : memref<8x32xf32, #tpu.memory_space<vmem>>, vector<8x32xf32>
    %c0_1 = arith.constant 0 : index
    %c0_2 = arith.constant 0 : index
    %1 = vector.load %arg2[%c0_1, %c0_2] : memref<8x32xf32, #tpu.memory_space<vmem>>, vector<8x32xf32>
    %2 = arith.mulf %0, %1 : vector<8x32xf32>
    %cst = arith.constant dense<0.000000e+00> : vector<8xf32>
    %3 = vector.multi_reduction <add>, %2, %cst [1] : vector<8x32xf32> to vector<8xf32>
    %4 = arith.mulf %0, %0 : vector<8x32xf32>
    %cst_3 = arith.constant dense<0.000000e+00> : vector<8xf32>
    %5 = vector.multi_reduction <add>, %4, %cst_3 [1] : vector<8x32xf32> to vector<8xf32>
    %6 = arith.mulf %1, %1 : vector<8x32xf32>
    %cst_4 = arith.constant dense<0.000000e+00> : vector<8xf32>
    %7 = vector.multi_reduction <add>, %6, %cst_4 [1] : vector<8x32xf32> to vector<8xf32>
    %8 = arith.mulf %5, %7 : vector<8xf32>
    %cst_5 = arith.constant 1.000000e-16 : f32
    %9 = vector.broadcast %cst_5 : f32 to vector<8xf32>
    %10 = arith.maximumf %8, %9 : vector<8xf32>
    %11 = math.rsqrt %10 : vector<8xf32>
    %12 = arith.mulf %3, %11 : vector<8xf32>
    %c0_6 = arith.constant 0 : index
    %c0_7 = arith.constant 0 : index
    %13 = vector.load %arg3[%c0_6, %c0_7] : memref<1x8xf32, #tpu.memory_space<vmem>>, vector<1x8xf32>
    %14 = vector.shape_cast %13 : vector<1x8xf32> to vector<8xf32>
    %15 = vector.shape_cast %12 : vector<8xf32> to vector<1x8xf32>
    tpu.vector_store %arg3[%c0_6, %c0_7], %15 {strides = array<i32>} : memref<1x8xf32, #tpu.memory_space<vmem>>, vector<1x8xf32>,
    return
  }
  func.func @transform_0(%arg0: i32) -> (i32, i32) {
    %c0_i32 = arith.constant 0 : i32
    %c0_i32_0 = arith.constant 0 : i32
    return %arg0, %c0_i32 : i32, i32
  }
  func.func @transform_1(%arg0: i32) -> (i32, i32) {
    %c0_i32 = arith.constant 0 : i32
    %c0_i32_0 = arith.constant 0 : i32
    return %arg0, %c0_i32 : i32, i32
  }
  func.func @transform_2(%arg0: i32) -> (i32, i32) {
    %c0_i32 = arith.constant 0 : i32
    %c0_i32_0 = arith.constant 0 : i32
    return %c0_i32, %arg0 : i32, i32
  }
}

</mosaic_0001>

<llo_original>
// kernel: tpu_custom_call.1
$region0: #{tpu_custom_call.1}
  #allocation0 [shape = 'u32[]', space=smem, size = 0x4, offset = 0x4, fixed_abs, tag = 'smem constant byte address 0x4 - core index']
  #allocation1 [shape = 'u32[144,128]{1,0:T(1,128)}', space=vmem, size = 0x12000, scoped, tag = 'internal scratch']
  %s0 = inlined_call_operand.hbm [shape: f32[8,32], index: 0, kind: input, shape index: {}]
  %s1 = inlined_call_operand.hbm [shape: f32[8,32], index: 1, kind: input, shape index: {}]
  %s2 = inlined_call_operand.hbm [shape: f32[1,8], index: 2, kind: output, shape index: {}]
  %s3 = sld [smem:[#allocation0]]
  $region26: #{tpu_custom_call.1} parent=0
    _
  %s5 = ssub.s32 1, %s3
  %s6 = scalar_select 0, %s5, %s3
  $region1: #{tpu_custom_call.1} parent=0
    #allocation2 [shape = 'u8[4096]{0}', space=vmem, size = 0x1000, scoped, tag = 'input window, operand 0, single buffered']
    #allocation3 [shape = 's32[1]{0}', space=sflag, size = 0x4, scoped, tag = 'scoped memory for tpu_custom_call.1']
    #allocation4 [shape = 's32[1]{0}', space=sflag, size = 0x4, scoped, tag = 'scoped memory for tpu_custom_call.1']
    #allocation5 [shape = 'u8[4096]{0}', space=vmem, size = 0x1000, scoped, tag = 'input window, operand 1, single buffered']
    #allocation6 [shape = 's32[1]{0}', space=sflag, size = 0x4, scoped, tag = 'scoped memory for tpu_custom_call.1']
    #allocation7 [shape = 'u8[512]{0}', space=vmem, size = 0x400, scoped, tag = 'output window, operand 0, single buffered']
    %7 = vsyncpa [#allocation3], 0
    %8 = vsyncpa [#allocation6], 0
    %9 = vsyncpa [#allocation4], 0
    // Predicated region
    $region2: #{tpu_custom_call.1} parent=1 // pred_check
      _
    $region3: #{tpu_custom_call.1} parent=1 // pred_check_branch
      %11 = sbr.rel (0) target = $region5
    $region4: #{tpu_custom_call.1} parent=1 // pred_region
      %s13 = ssub.s32 128, 128
      %14 = vsyncadd [#allocation3], %s13
      %s16 = sshll.u32 [#allocation2], 4
      %s17 = int_to_ptr.vmem [resolvable:$true] %s16
      %19 = dma.hbm_to_vmem [thread:$0]  %s0, 128, %s17, [#allocation3]
    $region5: #{tpu_custom_call.1} parent=1 // pred_fallthru
      _
    // Predicated region
    $region6: #{tpu_custom_call.1} parent=1 // pred_check
      _
    $region7: #{tpu_custom_call.1} parent=1 // pred_check_branch
      %21 = sbr.rel (0) target = $region9
    $region8: #{tpu_custom_call.1} parent=1 // pred_region
      %s23 = ssub.s32 128, 128
      %24 = vsyncadd [#allocation6], %s23
      %s26 = sshll.u32 [#allocation5], 4
      %s27 = int_to_ptr.vmem [resolvable:$true] %s26
      %29 = dma.hbm_to_vmem [thread:$0]  %s1, 128, %s27, [#allocation6]
    $region9: #{tpu_custom_call.1} parent=1 // pred_fallthru
      _
    // Predicated region
    $region10: #{tpu_custom_call.1} parent=1 // pred_check
      _
    $region11: #{tpu_custom_call.1} parent=1 // pred_check_branch
      %31 = sbr.rel (0) target = $region13
    $region12: #{tpu_custom_call.1} parent=1 // pred_region
      %32 = dma.done [#allocation3], 128
    $region13: #{tpu_custom_call.1} parent=1 // pred_fallthru
      _
    // Predicated region
    $region14: #{tpu_custom_call.1} parent=1 // pred_check
      _
    $region15: #{tpu_custom_call.1} parent=1 // pred_check_branch
      %34 = sbr.rel (0) target = $region17
    $region16: #{tpu_custom_call.1} parent=1 // pred_region
      %35 = dma.done [#allocation6], 128
    $region17: #{tpu_custom_call.1} parent=1 // pred_fallthru
      _
    %v36 = vld [vmem:[#allocation2] sm:$0xff]
    %v37 = vld [vmem:[#allocation5] sm:$0xff]
    %v38 = vmul.f32 %v36, %v37
    %vm39 = vcmask 261120
    %v40 = vsel %vm39, %v38, 0.0
    %41 = vadd.xlane.f32.xlu0 %v40
    %v42 = vpop.xlane.xlu0 %41
    %v43 = vmul.f32 %v36, %v36
    %v44 = vsel %vm39, %v43, 0.0
    %45 = vadd.xlane.f32.xlu0 %v44
    %v46 = vpop.xlane.xlu0 %45
    %v47 = vmul.f32 %v37, %v37
    %v48 = vsel %vm39, %v47, 0.0
    %49 = vadd.xlane.f32.xlu0 %v48
    %v50 = vpop.xlane.xlu0 %49
    %v51 = vmul.f32 %v46, %v50
    %v52 = vmax.f32 %v51, 1e-16
    %v53 = vrsqrt.pop %v52
    %v54 = vmul.f32 %v42, %v53
    %v56 = vlaneseq
    %v57 = vand.u32 %v56, 127
    %v58 = vlaneseq
    %v59 = vshrl.u32 %v58, 7
    %v60 = vsub.s32 %v57, %v59
    %v61 = vrot.slane %v54, %v60
    %vm63 = vcmask 57344
    %64 = vst.msk [vmem:[#allocation7] sm:$0x1] %vm63, %v61
    // Predicated region
    $region18: #{tpu_custom_call.1} parent=1 // pred_check
      _
    $region19: #{tpu_custom_call.1} parent=1 // pred_check_branch
      %66 = sbr.rel (0) target = $region21
    $region20: #{tpu_custom_call.1} parent=1 // pred_region
      %s68 = ssub.s32 16, 16
      %69 = vsyncadd [#allocation4], %s68
      %s71 = sshll.u32 [#allocation7], 4
      %s72 = int_to_ptr.vmem [resolvable:$true] %s71
      %74 = dma.vmem_to_hbm [thread:$0]  %s72, 16, %s2, [#allocation4]
    $region21: #{tpu_custom_call.1} parent=1 // pred_fallthru
      _
    // Predicated region
    $region22: #{tpu_custom_call.1} parent=1 // pred_check
      _
    $region23: #{tpu_custom_call.1} parent=1 // pred_check_branch
      %76 = sbr.rel (0) target = $region25
    $region24: #{tpu_custom_call.1} parent=1 // pred_region
      %77 = dma.done [#allocation4], 16
    $region25: #{tpu_custom_call.1} parent=1 // pred_fallthru
      _
    %78 = vsyncpa [#allocation3], 1
    %79 = vsyncpa [#allocation6], 1
    %80 = vsyncpa [#allocation4], 1

</llo_original>
